<compile_context>
chip_gen: v7x
topology: tpu7x:2x2x1
jax: 0.10.0
libtpu: 0.0.40
codegen_flags: <defaults>
</compile_context>

<pallas_src>
import functools

import jax
import jax.numpy as jnp
from jax.experimental import pallas as pl
from jax.experimental.pallas import tpu as pltpu

HIDDEN = 128
LANE = 128
MAX_TILE_B = 8192


def _round_up(x, m):
    return ((x + m - 1) // m) * m


def dqn_kernel(x_ref, w1_ref, b1_ref, w2_ref, b2_ref, w3_ref, b3_ref, o_ref):
    # x_ref: (TILE_B, D_in_pad) bf16; w*: bf16; b*: f32; o_ref: (TILE_B, out_pad) bf16.
    h1 = jnp.dot(x_ref[...], w1_ref[...], preferred_element_type=jnp.float32)
    h1 = jnp.maximum(h1 + b1_ref[...], 0.0)                      # f32 bias + ReLU
    h2 = jnp.dot(h1.astype(jnp.bfloat16), w2_ref[...],
                 preferred_element_type=jnp.float32)
    h2 = jnp.maximum(h2 + b2_ref[...], 0.0)
    out = jnp.dot(h2.astype(jnp.bfloat16), w3_ref[...],
                  preferred_element_type=jnp.float32)
    # Single bf16 round on the store halves the dominant HBM writeback stream.
    o_ref[...] = (out + b3_ref[...]).astype(jnp.bfloat16)


def prepare_dqn_params(params):
    """Pad + cast weights ONCE (call at init / after param updates, not per step).

    params: (w1, b1, w2, b2, w3, b3) f32, weights stored (fan_in, fan_out).
    Returns (prepared_tuple, meta) where meta = (d_in, d_in_pad, out_dim, out_pad).
    """
    w1, b1, w2, b2, w3, b3 = params
    d_in = w1.shape[0]
    out_dim = w3.shape[1]
    d_in_pad = _round_up(d_in, 16)            # clean (16,128) bf16 tiles on layer-1 K
    out_pad = _round_up(out_dim, LANE)        # lane-dense (unmasked) output stores

    w1_p = jnp.zeros((d_in_pad, HIDDEN), jnp.bfloat16).at[:d_in, :].set(
        w1.astype(jnp.bfloat16))
    w2_p = w2.astype(jnp.bfloat16)
    w3_p = jnp.zeros((HIDDEN, out_pad), jnp.bfloat16).at[:, :out_dim].set(
        w3.astype(jnp.bfloat16))
    b1_p = b1.astype(jnp.float32).reshape(1, HIDDEN)
    b2_p = b2.astype(jnp.float32).reshape(1, HIDDEN)
    b3_p = jnp.zeros((1, out_pad), jnp.float32).at[:, :out_dim].set(
        b3.astype(jnp.float32).reshape(1, out_dim))

    prepared = (w1_p, b1_p, w2_p, b2_p, w3_p, b3_p)
    meta = (d_in, d_in_pad, out_dim, out_pad)
    return prepared, meta


def _pick_tile_b(B, requested):
    # Multiple of 16 (bf16 sublane packing), capped at MAX_TILE_B, and aimed at
    # >= 2 balanced grid steps so both v7x TensorCores get work.
    req = max(16, _round_up(min(requested, MAX_TILE_B), 16))
    balanced = max(16, _round_up(pl.cdiv(max(B, 1), 2), 16))
    return min(req, balanced)


@functools.partial(jax.jit, static_argnames=("meta", "tile_b"))
def dqn_forward(x, prepared, meta, *, tile_b=4096):
    """x: (B, d_in) f32. prepared/meta from prepare_dqn_params. Returns (B, out_dim) f32."""
    w1_p, b1_p, w2_p, b2_p, w3_p, b3_p = prepared
    d_in, d_in_pad, out_dim, out_pad = meta
    B = x.shape[0]

    tile_b = _pick_tile_b(B, tile_b)
    b_pad = _round_up(B, tile_b)
    n_tiles = b_pad // tile_b

    # Cast-only fast path; pad only if the batch / feature dims need it.
    x_bf = x.astype(jnp.bfloat16)
    pad_b, pad_d = b_pad - B, d_in_pad - d_in
    if pad_b or pad_d:
        x_bf = jnp.pad(x_bf, ((0, pad_b), (0, pad_d)))

    # Footprint-derived VMEM limit (double-buffered tiles + resident weights).
    w_bytes = (w1_p.size + w2_p.size + w3_p.size) * 2 \
        + (b1_p.size + b2_p.size + b3_p.size) * 4
    x_tile_bytes = tile_b * d_in_pad * 2
    o_tile_bytes = tile_b * out_pad * 2
    vmem_needed = 2 * (x_tile_bytes + o_tile_bytes + w_bytes) + (4 << 20)
    vmem_limit = int(min(max(vmem_needed, 8 << 20), 56 << 20))   # fits v7x 64 MiB

    flops = 2 * b_pad * (d_in_pad * HIDDEN + HIDDEN * HIDDEN + HIDDEN * out_pad)
    bytes_accessed = (x_bf.size * 2 + w_bytes + b_pad * out_pad * 2)

    out = pl.pallas_call(
        dqn_kernel,
        out_shape=jax.ShapeDtypeStruct((b_pad, out_pad), jnp.bfloat16),
        grid_spec=pltpu.PrefetchScalarGridSpec(
            num_scalar_prefetch=0,
            grid=(n_tiles,),
            in_specs=[
                pl.BlockSpec((tile_b, d_in_pad), lambda i: (i, 0)),   # x: batch-tiled
                pl.BlockSpec((d_in_pad, HIDDEN), lambda i: (0, 0)),   # weights resident
                pl.BlockSpec((1, HIDDEN), lambda i: (0, 0)),
                pl.BlockSpec((HIDDEN, HIDDEN), lambda i: (0, 0)),
                pl.BlockSpec((1, HIDDEN), lambda i: (0, 0)),
                pl.BlockSpec((HIDDEN, out_pad), lambda i: (0, 0)),
                pl.BlockSpec((1, out_pad), lambda i: (0, 0)),
            ],
            out_specs=pl.BlockSpec((tile_b, out_pad), lambda i: (i, 0)),
        ),
        compiler_params=pltpu.CompilerParams(
            dimension_semantics=("parallel",),        # megacore sharding on v7x
            vmem_limit_bytes=vmem_limit,
        ),
        cost_estimate=pl.CostEstimate(
            flops=flops, bytes_accessed=bytes_accessed, transcendentals=0),
    )(x_bf, w1_p, b1_p, w2_p, b2_p, w3_p, b3_p)

    return out[:B, :out_dim].astype(jnp.float32)


def init_dqn_params(key, input_dim, output_dim, hidden=HIDDEN):
    # Mimics PyTorch nn.Linear default init: U(-1/sqrt(fan_in), 1/sqrt(fan_in)).
    ks = jax.random.split(key, 6)

    def linear(kw, kb, fan_in, fan_out):
        bound = 1.0 / jnp.sqrt(float(fan_in))
        # weight stored as (fan_in, fan_out) so the kernel does x @ W directly
        w = jax.random.uniform(kw, (fan_in, fan_out), jnp.float32, -bound, bound)
        b = jax.random.uniform(kb, (1, fan_out), jnp.float32, -bound, bound)
        return w, b

    w1, b1 = linear(ks[0], ks[1], input_dim, hidden)
    w2, b2 = linear(ks[2], ks[3], hidden, hidden)
    w3, b3 = linear(ks[4], ks[5], hidden, output_dim)
    return (w1, b1, w2, b2, w3, b3)


def dqn_reference_bf16(x, params):
    # Same bf16-operand / f32-accumulate / final-bf16-round recipe as the kernel.
    w1, b1, w2, b2, w3, b3 = params
    h1 = jnp.dot(x.astype(jnp.bfloat16), w1.astype(jnp.bfloat16),
                 preferred_element_type=jnp.float32)
    h1 = jnp.maximum(h1 + b1, 0.0)
    h2 = jnp.dot(h1.astype(jnp.bfloat16), w2.astype(jnp.bfloat16),
                 preferred_element_type=jnp.float32)
    h2 = jnp.maximum(h2 + b2, 0.0)
    out = jnp.dot(h2.astype(jnp.bfloat16), w3.astype(jnp.bfloat16),
                  preferred_element_type=jnp.float32) + b3
    return out.astype(jnp.bfloat16).astype(jnp.float32)


def dqn_reference_f32(x, params):
    w1, b1, w2, b2, w3, b3 = params
    h1 = jnp.maximum(x @ w1 + b1, 0.0)
    h2 = jnp.maximum(h1 @ w2 + b2, 0.0)
    return h2 @ w3 + b3


if __name__ == "__main__":
    batch = 20          # not a multiple of the tile -> exercises batch padding
    input_dim = 16
    output_dim = 4

    key = jax.random.PRNGKey(0)
    k_x, k_p = jax.random.split(key)
    x = jax.random.normal(k_x, (batch, input_dim), jnp.float32)
    params = init_dqn_params(k_p, input_dim, output_dim)

    # Pad/cast the weights once, outside the per-step path.
    prepared, meta = prepare_dqn_params(params)
    prepared = jax.tree_util.tree_map(jax.block_until_ready, prepared)

    # For B=20 the tile picker chooses tile_b=16 -> 2 grid steps, exercising the
    # pipelined grid and the batch-padding path.
    out = dqn_forward(x, prepared, meta)
    out = jax.block_until_ready(out)
    assert out.shape == (batch, output_dim)

    ref_bf16 = dqn_reference_bf16(x, params)
    assert jnp.allclose(out, ref_bf16, atol=2e-3, rtol=2e-3), \
        "mismatch vs bf16-operand JAX reference"

    # Loose sanity check vs the full-f32 PyTorch-equivalent math (bf16 operands
    # + final bf16 output round introduce ~0.5% relative error).
    ref_f32 = dqn_reference_f32(x, params)
    assert jnp.allclose(out, ref_f32, atol=1e-1, rtol=1e-1), \
        "mismatch vs f32 JAX reference beyond bf16 tolerance"

    print("KERNEL_OK")
</pallas_src>

<mosaic_0001>
module attributes {stable_mosaic.version = 11 : i64} {
  func.func @dqn_kernel(%arg0: i32, %arg1: memref<16x16xbf16, #tpu.memory_space<vmem>>, %arg2: memref<16x128xbf16, #tpu.memory_space<vmem>>, %arg3: memref<1x128xf32, #tpu.memory_space<vmem>>, %arg4: memref<128x128xbf16, #tpu.memory_space<vmem>>, %arg5: memref<1x128xf32, #tpu.memory_space<vmem>>, %arg6: memref<128x128xbf16, #tpu.memory_space<vmem>>, %arg7: memref<1x128xf32, #tpu.memory_space<vmem>>, %arg8: memref<16x128xbf16, #tpu.memory_space<vmem>>) attributes {dimension_semantics = [#tpu.dimension_semantics<parallel>], iteration_bounds = array<i64: 2>, scalar_prefetch = 0 : i64, scratch_operands = 0 : i64, tpu.core_type = #tpu.core_type<tc>, window_params = [{transform_indices = @transform_0, window_bounds = array<i64: 16, 16>}, {pipeline_mode = #tpu.pipeline_mode<synchronous>, transform_indices = @transform_1, window_bounds = array<i64: 16, 128>}, {pipeline_mode = #tpu.pipeline_mode<synchronous>, transform_indices = @transform_2, window_bounds = array<i64: 1, 128>}, {pipeline_mode = #tpu.pipeline_mode<synchronous>, transform_indices = @transform_3, window_bounds = array<i64: 128, 128>}, {pipeline_mode = #tpu.pipeline_mode<synchronous>, transform_indices = @transform_4, window_bounds = array<i64: 1, 128>}, {pipeline_mode = #tpu.pipeline_mode<synchronous>, transform_indices = @transform_5, window_bounds = array<i64: 128, 128>}, {pipeline_mode = #tpu.pipeline_mode<synchronous>, transform_indices = @transform_6, window_bounds = array<i64: 1, 128>}, {transform_indices = @transform_7, window_bounds = array<i64: 16, 128>}]} {
    %c0 = arith.constant 0 : index
    %c0_0 = arith.constant 0 : index
    %0 = vector.load %arg1[%c0, %c0_0] : memref<16x16xbf16, #tpu.memory_space<vmem>>, vector<16x16xbf16>
    %c0_1 = arith.constant 0 : index
    %c0_2 = arith.constant 0 : index
    %1 = vector.load %arg2[%c0_1, %c0_2] : memref<16x128xbf16, #tpu.memory_space<vmem>>, vector<16x128xbf16>
    %cst = arith.constant dense<0.000000e+00> : vector<16x128xf32>
    %2 = tpu.matmul %0, %1, %cst {dimension_numbers = #tpu.dot_dimension_numbers<[1], [0], [0], [1], [0, 0, 1, 1], [], []>} : vector<16x16xbf16>, vector<16x128xbf16>, vector<16x128xf32> -> vector<16x128xf32>
    %c0_3 = arith.constant 0 : index
    %c0_4 = arith.constant 0 : index
    %3 = vector.load %arg3[%c0_3, %c0_4] : memref<1x128xf32, #tpu.memory_space<vmem>>, vector<1x128xf32>
    %4 = vector.broadcast %3 : vector<1x128xf32> to vector<16x128xf32>
    %5 = arith.addf %2, %4 : vector<16x128xf32>
    %cst_5 = arith.constant 0.000000e+00 : f32
    %6 = vector.broadcast %cst_5 : f32 to vector<16x128xf32>
    %7 = arith.maximumf %5, %6 : vector<16x128xf32>
    %8 = arith.truncf %7 : vector<16x128xf32> to vector<16x128xbf16>
    %c0_6 = arith.constant 0 : index
    %c0_7 = arith.constant 0 : index
    %9 = vector.load %arg4[%c0_6, %c0_7] : memref<128x128xbf16, #tpu.memory_space<vmem>>, vector<128x128xbf16>
    %cst_8 = arith.constant dense<0.000000e+00> : vector<16x128xf32>
    %10 = tpu.matmul %8, %9, %cst_8 {dimension_numbers = #tpu.dot_dimension_numbers<[1], [0], [0], [1], [0, 0, 1, 1], [], []>} : vector<16x128xbf16>, vector<128x128xbf16>, vector<16x128xf32> -> vector<16x128xf32>
    %c0_9 = arith.constant 0 : index
    %c0_10 = arith.constant 0 : index
    %11 = vector.load %arg5[%c0_9, %c0_10] : memref<1x128xf32, #tpu.memory_space<vmem>>, vector<1x128xf32>
    %12 = vector.broadcast %11 : vector<1x128xf32> to vector<16x128xf32>
    %13 = arith.addf %10, %12 : vector<16x128xf32>
    %cst_11 = arith.constant 0.000000e+00 : f32
    %14 = vector.broadcast %cst_11 : f32 to vector<16x128xf32>
    %15 = arith.maximumf %13, %14 : vector<16x128xf32>
    %16 = arith.truncf %15 : vector<16x128xf32> to vector<16x128xbf16>
    %c0_12 = arith.constant 0 : index
    %c0_13 = arith.constant 0 : index
    %17 = vector.load %arg6[%c0_12, %c0_13] : memref<128x128xbf16, #tpu.memory_space<vmem>>, vector<128x128xbf16>
    %cst_14 = arith.constant dense<0.000000e+00> : vector<16x128xf32>
    %18 = tpu.matmul %16, %17, %cst_14 {dimension_numbers = #tpu.dot_dimension_numbers<[1], [0], [0], [1], [0, 0, 1, 1], [], []>} : vector<16x128xbf16>, vector<128x128xbf16>, vector<16x128xf32> -> vector<16x128xf32>
    %c0_15 = arith.constant 0 : index
    %c0_16 = arith.constant 0 : index
    %19 = vector.load %arg7[%c0_15, %c0_16] : memref<1x128xf32, #tpu.memory_space<vmem>>, vector<1x128xf32>
    %20 = vector.broadcast %19 : vector<1x128xf32> to vector<16x128xf32>
    %21 = arith.addf %18, %20 : vector<16x128xf32>
    %22 = arith.truncf %21 : vector<16x128xf32> to vector<16x128xbf16>
    %c0_17 = arith.constant 0 : index
    %c0_18 = arith.constant 0 : index
    %23 = vector.load %arg8[%c0_17, %c0_18] : memref<16x128xbf16, #tpu.memory_space<vmem>>, vector<16x128xbf16>
    tpu.vector_store %arg8[%c0_17, %c0_18], %22 {strides = array<i32>} : memref<16x128xbf16, #tpu.memory_space<vmem>>, vector<16x128xbf16>,
    return
  }
  func.func @transform_0(%arg0: i32) -> (i32, i32) {
    %c0_i32 = arith.constant 0 : i32
    %c0_i32_0 = arith.constant 0 : i32
    return %arg0, %c0_i32 : i32, i32
  }
  func.func @transform_1(%arg0: i32) -> (i32, i32) {
    %c0_i32 = arith.constant 0 : i32
    %c0_i32_0 = arith.constant 0 : i32
    %c0_i32_1 = arith.constant 0 : i32
    return %c0_i32, %c0_i32_0 : i32, i32
  }
  func.func @transform_2(%arg0: i32) -> (i32, i32) {
    %c0_i32 = arith.constant 0 : i32
    %c0_i32_0 = arith.constant 0 : i32
    %c0_i32_1 = arith.constant 0 : i32
    return %c0_i32, %c0_i32_0 : i32, i32
  }
  func.func @transform_3(%arg0: i32) -> (i32, i32) {
    %c0_i32 = arith.constant 0 : i32
    %c0_i32_0 = arith.constant 0 : i32
    %c0_i32_1 = arith.constant 0 : i32
    return %c0_i32, %c0_i32_0 : i32, i32
  }
  func.func @transform_4(%arg0: i32) -> (i32, i32) {
    %c0_i32 = arith.constant 0 : i32
    %c0_i32_0 = arith.constant 0 : i32
    %c0_i32_1 = arith.constant 0 : i32
    return %c0_i32, %c0_i32_0 : i32, i32
  }
  func.func @transform_5(%arg0: i32) -> (i32, i32) {
    %c0_i32 = arith.constant 0 : i32
    %c0_i32_0 = arith.constant 0 : i32
    %c0_i32_1 = arith.constant 0 : i32
    return %c0_i32, %c0_i32_0 : i32, i32
  }
  func.func @transform_6(%arg0: i32) -> (i32, i32) {
    %c0_i32 = arith.constant 0 : i32
    %c0_i32_0 = arith.constant 0 : i32
    %c0_i32_1 = arith.constant 0 : i32
    return %c0_i32, %c0_i32_0 : i32, i32
  }
  func.func @transform_7(%arg0: i32) -> (i32, i32) {
    %c0_i32 = arith.constant 0 : i32
    %c0_i32_0 = arith.constant 0 : i32
    return %arg0, %c0_i32 : i32, i32
  }
}

</mosaic_0001>

<llo_original>
// kernel: dqn_forward.1
$region0: #{dqn_forward.1}
  #allocation0 [shape = 'u32[]', space=smem, size = 0x4, offset = 0x4, fixed_abs, tag = 'smem constant byte address 0x4 - core index']
  #allocation1 [shape = 'u32[144,128]{1,0:T(1,128)}', space=vmem, size = 0x12000, scoped, tag = 'internal scratch']
  %s0 = inlined_call_operand.vmem [shape: bf16[32,16], index: 0, kind: input, shape index: {}]
  %s1 = inlined_call_operand.vmem [shape: bf16[16,128], index: 1, kind: input, shape index: {}]
  %s2 = inlined_call_operand.vmem [shape: f32[1,128], index: 2, kind: input, shape index: {}]
  %s3 = inlined_call_operand.vmem [shape: bf16[128,128], index: 3, kind: input, shape index: {}]
  %s4 = inlined_call_operand.vmem [shape: f32[1,128], index: 4, kind: input, shape index: {}]
  %s5 = inlined_call_operand.hbm [shape: bf16[128,128], index: 5, kind: input, shape index: {}]
  %s6 = inlined_call_operand.vmem [shape: f32[1,128], index: 6, kind: input, shape index: {}]
  %s7 = inlined_call_operand.vmem [shape: bf16[32,128], index: 7, kind: output, shape index: {}]
  %s8 = sld [smem:[#allocation0]]
  $region65: #{dqn_forward.1} parent=0
    _
  %s10 = ssub.s32 1, %s8
  %s11 = scalar_select 0, %s10, %s8
  $region1: #{dqn_forward.1} parent=0
    #allocation2 [shape = 'u8[32768]{0}', space=vmem, size = 0x8000, scoped, tag = 'input window, operand 5, single buffered']
    #allocation3 [shape = 's32[2]{0}', space=sflag, size = 0x8, scoped, tag = 'scoped memory for dqn_forward.1']
    %12 = vsyncpa [#allocation3], 0
    loop: start=0, step=1, limit=4
    $region2: #{dqn_forward.1} parent=1 // loop_pre_header
      _
    $region3: #{dqn_forward.1} parent=1 // loop_header
      %s14 = sphi 0, %s18
      %p15 = scmp.ge.s32.totalorder %s14, 4
      %s24 = sphi 0, %s26
      %s27 = sphi 0, %s24
      %s28 = sphi 0, %s27
      %s44 = sphi 0, %s28
      %s48 = sphi 0, %s48
      %s50 = sphi 0, %s48
      %s51 = sphi 0, %s50
      %s65 = sphi 0, %s51
      %s69 = sphi 0, %s69
      %s71 = sphi 0, %s69
      %s72 = sphi 0, %s71
      %s86 = sphi 0, %s72
      %s90 = sphi 0, %s90
      %s92 = sphi 0, %s90
      %s93 = sphi 0, %s92
      %s107 = sphi 0, %s93
      %s111 = sphi 0, %s111
      %s113 = sphi 0, %s111
      %s114 = sphi 0, %s113
      %s128 = sphi 0, %s114
      %s132 = sphi 0, %s132
      %s134 = sphi 0, %s132
      %s135 = sphi 0, %s134
      %s149 = sphi 0, %s135
      %s153 = sphi 0, %s153
      %s155 = sphi 0, %s153
      %s156 = sphi 0, %s155
      %s170 = sphi 0, %s156
      %s176 = sphi 0, %s178
      %s179 = sphi 0, %s176
      %s180 = sphi 0, %s179
      %s196 = sphi 0, %s180
    $region4: #{dqn_forward.1} parent=1 // loop_header_branch
      %17 = sbr.rel (%p15) target = $region8
    $region5: #{dqn_forward.1} parent=1 // loop_body
      %s19 = ssub.s32 %s14, 1
      %s20 = ssub.s32 %s14, 2
      %s21 = sadd.s32 %s14, 1
      %s22 = ssub.s32 %s14, %s21
      %p23 = scmp.eq.s32.totalorder %s22, 0
      %s25 = sadd.s32 %s24, 1
      %s26 = scalar_select %p23, %s24, %s25
      %p29 = pneg %p23
      %p30 = scmp.eq.s32.totalorder %s14, 1
      %p31 = por %p29, %p30
      %p32 = scmp.ne.s32.totalorder %s24, %s27
      %p33 = scmp.eq.s32.totalorder %s14, 0
      %p34 = por %p32, %p33
      %p35 = scmp.ne.s32.totalorder %s24, %s27
      %p36 = scmp.eq.s32.totalorder %s19, 1
      %p37 = por %p35, %p36
      %p38 = scmp.ne.s32.totalorder %s27, %s28
      %p39 = scmp.eq.s32.totalorder %s19, 0
      %p40 = por %p38, %p39
      %p41 = scmp.ne.s32.totalorder %s27, %s28
      %p42 = scmp.eq.s32.totalorder %s20, 1
      %p43 = por %p41, %p42
      %p45 = scmp.ne.s32.totalorder %s28, %s44
      %p46 = scmp.eq.s32.totalorder %s20, 0
      %p47 = por %p45, %p46
      %s49 = sadd.s32 %s48, 1
      %p52 = scmp.eq.s32.totalorder %s14, 1
      %p53 = scmp.ne.s32.totalorder %s48, %s50
      %p54 = scmp.eq.s32.totalorder %s14, 0
      %p55 = por %p53, %p54
      %p56 = scmp.ne.s32.totalorder %s48, %s50
      %p57 = scmp.eq.s32.totalorder %s19, 1
      %p58 = por %p56, %p57
      %p59 = scmp.ne.s32.totalorder %s50, %s51
      %p60 = scmp.eq.s32.totalorder %s19, 0
      %p61 = por %p59, %p60
      %p62 = scmp.ne.s32.totalorder %s50, %s51
      %p63 = scmp.eq.s32.totalorder %s20, 1
      %p64 = por %p62, %p63
      %p66 = scmp.ne.s32.totalorder %s51, %s65
      %p67 = scmp.eq.s32.totalorder %s20, 0
      %p68 = por %p66, %p67
      %s70 = sadd.s32 %s69, 1
      %p73 = scmp.eq.s32.totalorder %s14, 1
      %p74 = scmp.ne.s32.totalorder %s69, %s71
      %p75 = scmp.eq.s32.totalorder %s14, 0
      %p76 = por %p74, %p75
      %p77 = scmp.ne.s32.totalorder %s69, %s71
      %p78 = scmp.eq.s32.totalorder %s19, 1
      %p79 = por %p77, %p78
      %p80 = scmp.ne.s32.totalorder %s71, %s72
      %p81 = scmp.eq.s32.totalorder %s19, 0
      %p82 = por %p80, %p81
      %p83 = scmp.ne.s32.totalorder %s71, %s72
      %p84 = scmp.eq.s32.totalorder %s20, 1
      %p85 = por %p83, %p84
      %p87 = scmp.ne.s32.totalorder %s72, %s86
      %p88 = scmp.eq.s32.totalorder %s20, 0
      %p89 = por %p87, %p88
      %s91 = sadd.s32 %s90, 1
      %p94 = scmp.eq.s32.totalorder %s14, 1
      %p95 = scmp.ne.s32.totalorder %s90, %s92
      %p96 = scmp.eq.s32.totalorder %s14, 0
      %p97 = por %p95, %p96
      %p98 = scmp.ne.s32.totalorder %s90, %s92
      %p99 = scmp.eq.s32.totalorder %s19, 1
      %p100 = por %p98, %p99
      %p101 = scmp.ne.s32.totalorder %s92, %s93
      %p102 = scmp.eq.s32.totalorder %s19, 0
      %p103 = por %p101, %p102
      %p104 = scmp.ne.s32.totalorder %s92, %s93
      %p105 = scmp.eq.s32.totalorder %s20, 1
      %p106 = por %p104, %p105
      %p108 = scmp.ne.s32.totalorder %s93, %s107
      %p109 = scmp.eq.s32.totalorder %s20, 0
      %p110 = por %p108, %p109
      %s112 = sadd.s32 %s111, 1
      %p115 = scmp.eq.s32.totalorder %s14, 1
      %p116 = scmp.ne.s32.totalorder %s111, %s113
      %p117 = scmp.eq.s32.totalorder %s14, 0
      %p118 = por %p116, %p117
      %p119 = scmp.ne.s32.totalorder %s111, %s113
      %p120 = scmp.eq.s32.totalorder %s19, 1
      %p121 = por %p119, %p120
      %p122 = scmp.ne.s32.totalorder %s113, %s114
      %p123 = scmp.eq.s32.totalorder %s19, 0
      %p124 = por %p122, %p123
      %p125 = scmp.ne.s32.totalorder %s113, %s114
      %p126 = scmp.eq.s32.totalorder %s20, 1
      %p127 = por %p125, %p126
      %p129 = scmp.ne.s32.totalorder %s114, %s128
      %p130 = scmp.eq.s32.totalorder %s20, 0
      %p131 = por %p129, %p130
      %s133 = sadd.s32 %s132, 1
      %p136 = scmp.eq.s32.totalorder %s14, 1
      %p137 = scmp.ne.s32.totalorder %s132, %s134
      %p138 = scmp.eq.s32.totalorder %s14, 0
      %p139 = por %p137, %p138
      %p140 = scmp.ne.s32.totalorder %s132, %s134
      %p141 = scmp.eq.s32.totalorder %s19, 1
      %p142 = por %p140, %p141
      %p143 = scmp.ne.s32.totalorder %s134, %s135
      %p144 = scmp.eq.s32.totalorder %s19, 0
      %p145 = por %p143, %p144
      %p146 = scmp.ne.s32.totalorder %s134, %s135
      %p147 = scmp.eq.s32.totalorder %s20, 1
      %p148 = por %p146, %p147
      %p150 = scmp.ne.s32.totalorder %s135, %s149
      %p151 = scmp.eq.s32.totalorder %s20, 0
      %p152 = por %p150, %p151
      %s154 = sadd.s32 %s153, 1
      %p157 = scmp.eq.s32.totalorder %s14, 1
      %p158 = scmp.ne.s32.totalorder %s153, %s155
      %p159 = scmp.eq.s32.totalorder %s14, 0
      %p160 = por %p158, %p159
      %p161 = scmp.ne.s32.totalorder %s153, %s155
      %p162 = scmp.eq.s32.totalorder %s19, 1
      %p163 = por %p161, %p162
      %p164 = scmp.ne.s32.totalorder %s155, %s156
      %p165 = scmp.eq.s32.totalorder %s19, 0
      %p166 = por %p164, %p165
      %p167 = scmp.ne.s32.totalorder %s155, %s156
      %p168 = scmp.eq.s32.totalorder %s20, 1
      %p169 = por %p167, %p168
      %p171 = scmp.ne.s32.totalorder %s156, %s170
      %p172 = scmp.eq.s32.totalorder %s20, 0
      %p173 = por %p171, %p172
      %s174 = ssub.s32 %s14, %s21
      %p175 = scmp.eq.s32.totalorder %s174, 0
      %s177 = sadd.s32 %s176, 1
      %s178 = scalar_select %p175, %s176, %s177
      %p181 = pneg %p175
      %p182 = scmp.eq.s32.totalorder %s14, 1
      %p183 = por %p181, %p182
      %p184 = scmp.ne.s32.totalorder %s176, %s179
      %p185 = scmp.eq.s32.totalorder %s14, 0
      %p186 = por %p184, %p185
      %p187 = scmp.ne.s32.totalorder %s176, %s179
      %p188 = scmp.eq.s32.totalorder %s19, 1
      %p189 = por %p187, %p188
      %p190 = scmp.ne.s32.totalorder %s179, %s180
      %p191 = scmp.eq.s32.totalorder %s19, 0
      %p192 = por %p190, %p191
      %p193 = scmp.ne.s32.totalorder %s179, %s180
      %p194 = scmp.eq.s32.totalorder %s20, 1
      %p195 = por %p193, %p194
      %p197 = scmp.ne.s32.totalorder %s180, %s196
      %p198 = scmp.eq.s32.totalorder %s20, 0
      %p199 = por %p197, %p198
      %p200 = scmp.le.s32.totalorder 1, %s14
      %p201 = scmp.lt.s32.totalorder %s14, 3
      %p202 = pnand %p200, %p201
      %p203 = pneg %p202
      // Predicated region
      $region9: #{dqn_forward.1} parent=5 // pred_check
        _
      $region10: #{dqn_forward.1} parent=5 // pred_check_branch
        %205 = sbr.rel (%p202) target = $region12
      $region11: #{dqn_forward.1} parent=5 // pred_region
        %s206 = ssub.s32 %s14, 1
        // Predicated region
        $region13: #{dqn_forward.1} parent=11 // pred_check
          %p207 = pneg %p61
        $region14: #{dqn_forward.1} parent=11 // pred_check_branch
          %209 = sbr.rel (%p207) target = $region16
        $region15: #{dqn_forward.1} parent=11 // pred_region
          _
        $region16: #{dqn_forward.1} parent=11 // pred_fallthru
          _
        // Predicated region
        $region17: #{dqn_forward.1} parent=11 // pred_check
          %p210 = pneg %p82
        $region18: #{dqn_forward.1} parent=11 // pred_check_branch
          %212 = sbr.rel (%p210) target = $region20
        $region19: #{dqn_forward.1} parent=11 // pred_region
          _
        $region20: #{dqn_forward.1} parent=11 // pred_fallthru
          _
        // Predicated region
        $region21: #{dqn_forward.1} parent=11 // pred_check
          %p213 = pneg %p103
        $region22: #{dqn_forward.1} parent=11 // pred_check_branch
          %215 = sbr.rel (%p213) target = $region24
        $region23: #{dqn_forward.1} parent=11 // pred_region
          _
        $region24: #{dqn_forward.1} parent=11 // pred_fallthru
          _
        // Predicated region
        $region25: #{dqn_forward.1} parent=11 // pred_check
          %p216 = pneg %p124
        $region26: #{dqn_forward.1} parent=11 // pred_check_branch
          %218 = sbr.rel (%p216) target = $region28
        $region27: #{dqn_forward.1} parent=11 // pred_region
          _
        $region28: #{dqn_forward.1} parent=11 // pred_fallthru
          _
        // Predicated region
        $region29: #{dqn_forward.1} parent=11 // pred_check
          %p219 = pneg %p145
        $region30: #{dqn_forward.1} parent=11 // pred_check_branch
          %221 = sbr.rel (%p219) target = $region32
        $region31: #{dqn_forward.1} parent=11 // pred_region
          %s223 = ssub.s32 1024, 1024
          %224 = vsyncadd [#allocation3], %s223
          %s225 = sshll.u32 [#allocation2], 4
          %s226 = int_to_ptr.vmem [resolvable:$true] %s225
          %231 = dma.hbm_to_vmem [thread:$0]  %s5, 1024, %s226, [#allocation3], 64, 64, 4
        $region32: #{dqn_forward.1} parent=11 // pred_fallthru
          _
        // Predicated region
        $region33: #{dqn_forward.1} parent=11 // pred_check
          %p232 = pneg %p166
        $region34: #{dqn_forward.1} parent=11 // pred_check_branch
          %234 = sbr.rel (%p232) target = $region36
        $region35: #{dqn_forward.1} parent=11 // pred_region
          _
        $region36: #{dqn_forward.1} parent=11 // pred_fallthru
          _
      $region12: #{dqn_forward.1} parent=5 // pred_fallthru
        _
      %p235 = scmp.lt.s32.totalorder %s14, 2
      // Predicated region
      $region37: #{dqn_forward.1} parent=5 // pred_check
        %p236 = pneg %p235
      $region38: #{dqn_forward.1} parent=5 // pred_check_branch
        %238 = sbr.rel (%p236) target = $region40
      $region39: #{dqn_forward.1} parent=5 // pred_region
        // Predicated region
        $region41: #{dqn_forward.1} parent=39 // pred_check
          %p239 = pneg %p34
        $region42: #{dqn_forward.1} parent=39 // pred_check_branch
          %241 = sbr.rel (%p239) target = $region44
        $region43: #{dqn_forward.1} parent=39 // pred_region
          %s242 = smul.u32 2, %s14
          %p243 = scmp.lt.s32.totalorder %s242, 3
          %s244 = scalar_select %p243, %s242, 3
          %s245 = smul.addr %s244, 4
          %s246 = scalar_lea.vmem %s0, %s245
          %s247 = smul.u32 2, %s14
        $region44: #{dqn_forward.1} parent=39 // pred_fallthru
          _
      $region40: #{dqn_forward.1} parent=5 // pred_fallthru
        _
      %p248 = scmp.le.s32.totalorder 1, %s14
      %p249 = scmp.lt.s32.totalorder %s14, 3
      %p250 = pnand %p248, %p249
      %p251 = pneg %p250
      // Predicated region
      $region45: #{dqn_forward.1} parent=5 // pred_check
        _
      $region46: #{dqn_forward.1} parent=5 // pred_check_branch
        %253 = sbr.rel (%p250) target = $region48
      $region47: #{dqn_forward.1} parent=5 // pred_region
        %s254 = ssub.s32 %s14, 1
        // Predicated region
        $region49: #{dqn_forward.1} parent=47 // pred_check
          %p255 = pneg %p145
        $region50: #{dqn_forward.1} parent=47 // pred_check_branch
          %257 = sbr.rel (%p255) target = $region52
        $region51: #{dqn_forward.1} parent=47 // pred_region
          %258 = dma.done [#allocation3], 1024
        $region52: #{dqn_forward.1} parent=47 // pred_fallthru
          _
        %s259 = smul.u32 2, %s19
        %p260 = scmp.lt.s32.totalorder %s259, 3
        %s261 = scalar_select %p260, %s259, 3
        %s262 = smul.addr %s261, 4
        %s263 = scalar_lea.vmem %s0, %s262
        %p264 = pneg %p40
        %p265 = pneg %p37
        %p266 = pneg %p61
        %p267 = pneg %p58
        %p268 = pneg %p82
        %p269 = pneg %p79
        %p270 = pneg %p103
        %p271 = pneg %p100
        %p272 = pneg %p124
        %p273 = pneg %p121
        %p274 = pneg %p145
        %p275 = pneg %p142
        %p276 = pneg %p166
        %p277 = pneg %p163
        %p278 = pneg %p192
        %p279 = pneg %p189
        %s280 = smul.u32 2, %s19
        %p281 = scmp.lt.s32.totalorder %s280, 3
        %s282 = scalar_select %p281, %s280, 3
        %s283 = smul.addr %s282, 4
        %s284 = scalar_lea.vmem %s7, %s283
        %s285 = smul.u32 2, %s19
        %p286 = scmp.lt.s32.totalorder %s285, 3
        %s287 = scalar_select %p286, %s285, 3
        %s288 = smul.addr %s287, 4
        %s289 = scalar_lea.vmem %s0, %s288
        %s290 = smul.u32 2, %s19
        %s291 = smul.u32 2, %s19
        %p292 = scmp.lt.s32.totalorder %s291, 3
        %s293 = scalar_select %p292, %s291, 3
        %s294 = smul.addr %s293, 4
        %s295 = scalar_lea.vmem %s7, %s294
        %s296 = smul.u32 2, %s19
        %v298 = vld [vmem:[%s289] sm:$0xf]
        %v299 = vld [vmem:[%s289 + $0x4] sm:$0xf]
        %v300 = vld [vmem:[%s1] sm:$0xf]
        %v301 = vld [vmem:[%s1 + $0x4] sm:$0xf]
        %v302 = vld [vmem:[%s2] sm:$0x1]
        %v304 = vlaneseq
        %v305 = vshrl.u32 %v304, 7
        %v306 = vsub.s32 0, %v305
        %v307 = vrot.slane %v302, %v306
        %v311 = vunpack.c.l.b16 %v298
        %v312 = vunpack.c.l.b16 %v299
        %v313 = vpack.c.b16 %v312, %v311
        %v316 = vunpack.c.l.b16 %v300
        %v317 = vunpack.c.l.b16 %v301
        %v318 = vpack.c.b16 %v317, %v316
        %vm320 = vcmask 130048
        %v322 = vsel %vm320, %v313, 0
        %324 = vmatprep.subr.bf16.mxu0 0
        %325 = vmatpush1.bf16.msra.mxu0 %v318
        %326 = vmatprep.subr.bf16.mxu0 0
        %327 = vmatpush1.bf16.msra.mxu0 0
        %328 = vmatprep.subr.bf16.mxu0 0
        %329 = vmatpush1.bf16.msra.mxu0 0
        %330 = vmatprep.subr.bf16.mxu0 0
        %331 = vmatpush1.bf16.msra.mxu0 0
        %332 = vmatprep.subr.bf16.mxu0 0
        %333 = vmatpush1.bf16.msra.mxu0 0
        %334 = vmatprep.subr.bf16.mxu0 0
        %335 = vmatpush1.bf16.msra.mxu0 0
        %336 = vmatprep.subr.bf16.mxu0 0
        %337 = vmatpush1.bf16.msra.mxu0 0
        %338 = vmatprep.subr.bf16.mxu0 0
        %339 = vmatpush1.bf16.msra.mxu0 0
        %340 = vmatprep.subr.bf16.mxu0 0
        %341 = vmatpush1.bf16.msra.mxu0 0
        %342 = vmatprep.subr.bf16.mxu0 0
        %343 = vmatpush1.bf16.msra.mxu0 0
        %344 = vmatprep.subr.bf16.mxu0 0
        %345 = vmatpush1.bf16.msra.mxu0 0
        %346 = vmatprep.subr.bf16.mxu0 0
        %347 = vmatpush1.bf16.msra.mxu0 0
        %348 = vmatprep.subr.bf16.mxu0 0
        %349 = vmatpush1.bf16.msra.mxu0 0
        %350 = vmatprep.subr.bf16.mxu0 0
        %351 = vmatpush1.bf16.msra.mxu0 0
        %352 = vmatprep.subr.bf16.mxu0 0
        %353 = vmatpush1.bf16.msra.mxu0 0
        %354 = vmatprep.subr.bf16.mxu0 0
        %355 = vmatpush1.bf16.msra.mxu0 0
        %356 = vmatprep.mubr.bf16.mxu0 0
        %357 = vmatmul.mubr.bf16.gmra.mrb[0].mxu0 %v322
        %v358 = vpop.f32.mrb[0].mxu0
        %v359 = vadd.f32 %v307, %v358
        %v360 = vpop.f32.mrb[0].mxu0
        %v361 = vpop.f32.mrb[0].mxu0
        %v362 = vadd.f32 %v307, %v361
        %v363 = vpop.f32.mrb[0].mxu0
        %364 = vdwg.mxu0
        %v365 = vmax.f32 %v359, 0.0
        %v366 = vmax.f32 %v362, 0.0
        %v367 = vpack.c.bf16 %v366, %v365
        %v368 = vld [vmem:[%s3] sm:$0xf]
        %v369 = vld [vmem:[%s3 + $0x4] sm:$0xf]
        %v370 = vld [vmem:[%s3 + $0x8] sm:$0xf]
        %v371 = vld [vmem:[%s3 + $0xc] sm:$0xf]
        %v372 = vld [vmem:[%s3 + $0x10] sm:$0xf]
        %v373 = vld [vmem:[%s3 + $0x14] sm:$0xf]
        %v374 = vld [vmem:[%s3 + $0x18] sm:$0xf]
        %v375 = vld [vmem:[%s3 + $0x1c] sm:$0xf]
        %v376 = vld [vmem:[%s3 + $0x20] sm:$0xf]
        %v377 = vld [vmem:[%s3 + $0x24] sm:$0xf]
        %v378 = vld [vmem:[%s3 + $0x28] sm:$0xf]
        %v379 = vld [vmem:[%s3 + $0x2c] sm:$0xf]
        %v380 = vld [vmem:[%s3 + $0x30] sm:$0xf]
        %v381 = vld [vmem:[%s3 + $0x34] sm:$0xf]
        %v382 = vld [vmem:[%s3 + $0x38] sm:$0xf]
        %v383 = vld [vmem:[%s3 + $0x3c] sm:$0xf]
        %v384 = vld [vmem:[%s4] sm:$0x1]
        %v386 = vlaneseq
        %v387 = vshrl.u32 %v386, 7
        %v388 = vsub.s32 0, %v387
        %v389 = vrot.slane %v384, %v388
        %v407 = vunpack.c.l.b16 %v368
        %v408 = vunpack.c.l.b16 %v369
        %v409 = vunpack.c.l.b16 %v370
        %v410 = vunpack.c.l.b16 %v371
        %v411 = vunpack.c.l.b16 %v372
        %v412 = vunpack.c.l.b16 %v373
        %v413 = vunpack.c.l.b16 %v374
        %v414 = vunpack.c.l.b16 %v375
        %v415 = vunpack.c.l.b16 %v376
        %v416 = vunpack.c.l.b16 %v377
        %v417 = vunpack.c.l.b16 %v378
        %v418 = vunpack.c.l.b16 %v379
        %v419 = vunpack.c.l.b16 %v380
        %v420 = vunpack.c.l.b16 %v381
        %v421 = vunpack.c.l.b16 %v382
        %v422 = vunpack.c.l.b16 %v383
        %v423 = vpack.c.b16 %v408, %v407
        %v424 = vpack.c.b16 %v410, %v409
        %v425 = vpack.c.b16 %v412, %v411
        %v426 = vpack.c.b16 %v414, %v413
        %v427 = vpack.c.b16 %v416, %v415
        %v428 = vpack.c.b16 %v418, %v417
        %v429 = vpack.c.b16 %v420, %v419
        %v430 = vpack.c.b16 %v422, %v421
        %439 = vmatprep.subr.bf16.mxu0 0
        %440 = vmatpush1.bf16.msra.mxu0 %v423
        %441 = vmatprep.subr.bf16.mxu0 0
        %442 = vmatpush1.bf16.msra.mxu0 %v424
        %443 = vmatprep.subr.bf16.mxu0 0
        %444 = vmatpush1.bf16.msra.mxu0 %v425
        %445 = vmatprep.subr.bf16.mxu0 0
        %446 = vmatpush1.bf16.msra.mxu0 %v426
        %447 = vmatprep.subr.bf16.mxu0 0
        %448 = vmatpush1.bf16.msra.mxu0 %v427
        %449 = vmatprep.subr.bf16.mxu0 0
        %450 = vmatpush1.bf16.msra.mxu0 %v428
        %451 = vmatprep.subr.bf16.mxu0 0
        %452 = vmatpush1.bf16.msra.mxu0 %v429
        %453 = vmatprep.subr.bf16.mxu0 0
        %454 = vmatpush1.bf16.msra.mxu0 %v430
        %455 = vmatprep.subr.bf16.mxu0 0
        %456 = vmatpush1.bf16.msra.mxu0 0
        %457 = vmatprep.subr.bf16.mxu0 0
        %458 = vmatpush1.bf16.msra.mxu0 0
        %459 = vmatprep.subr.bf16.mxu0 0
        %460 = vmatpush1.bf16.msra.mxu0 0
        %461 = vmatprep.subr.bf16.mxu0 0
        %462 = vmatpush1.bf16.msra.mxu0 0
        %463 = vmatprep.subr.bf16.mxu0 0
        %464 = vmatpush1.bf16.msra.mxu0 0
        %465 = vmatprep.subr.bf16.mxu0 0
        %466 = vmatpush1.bf16.msra.mxu0 0
        %467 = vmatprep.subr.bf16.mxu0 0
        %468 = vmatpush1.bf16.msra.mxu0 0
        %469 = vmatprep.subr.bf16.mxu0 0
        %470 = vmatpush1.bf16.msra.mxu0 0
        %471 = vmatprep.mubr.bf16.mxu0 0
        %472 = vmatmul.mubr.bf16.gmra.mrb[0].mxu0 %v367
        %v473 = vpop.f32.mrb[0].mxu0
        %v474 = vadd.f32 %v389, %v473
        %v475 = vpop.f32.mrb[0].mxu0
        %v476 = vpop.f32.mrb[0].mxu0
        %v477 = vadd.f32 %v389, %v476
        %v478 = vpop.f32.mrb[0].mxu0
        %479 = vdwg.mxu0
        %v480 = vmax.f32 %v474, 0.0
        %v481 = vmax.f32 %v477, 0.0
        %v482 = vpack.c.bf16 %v481, %v480
        %v483 = vld [vmem:[#allocation2] sm:$0xf]
        %v484 = vld [vmem:[#allocation2 + $0x4] sm:$0xf]
        %v485 = vld [vmem:[#allocation2 + $0x8] sm:$0xf]
        %v486 = vld [vmem:[#allocation2 + $0xc] sm:$0xf]
        %v487 = vld [vmem:[#allocation2 + $0x10] sm:$0xf]
        %v488 = vld [vmem:[#allocation2 + $0x14] sm:$0xf]
        %v489 = vld [vmem:[#allocation2 + $0x18] sm:$0xf]
        %v490 = vld [vmem:[#allocation2 + $0x1c] sm:$0xf]
        %v491 = vld [vmem:[#allocation2 + $0x20] sm:$0xf]
        %v492 = vld [vmem:[#allocation2 + $0x24] sm:$0xf]
        %v493 = vld [vmem:[#allocation2 + $0x28] sm:$0xf]
        %v494 = vld [vmem:[#allocation2 + $0x2c] sm:$0xf]
        %v495 = vld [vmem:[#allocation2 + $0x30] sm:$0xf]
        %v496 = vld [vmem:[#allocation2 + $0x34] sm:$0xf]
        %v497 = vld [vmem:[#allocation2 + $0x38] sm:$0xf]
        %v498 = vld [vmem:[#allocation2 + $0x3c] sm:$0xf]
        %v499 = vld [vmem:[%s6] sm:$0x1]
        %v501 = vlaneseq
        %v502 = vshrl.u32 %v501, 7
        %v503 = vsub.s32 0, %v502
        %v504 = vrot.slane %v499, %v503
        %v522 = vunpack.c.l.b16 %v483
        %v523 = vunpack.c.l.b16 %v484
        %v524 = vunpack.c.l.b16 %v485
        %v525 = vunpack.c.l.b16 %v486
        %v526 = vunpack.c.l.b16 %v487
        %v527 = vunpack.c.l.b16 %v488
        %v528 = vunpack.c.l.b16 %v489
        %v529 = vunpack.c.l.b16 %v490
        %v530 = vunpack.c.l.b16 %v491
        %v531 = vunpack.c.l.b16 %v492
        %v532 = vunpack.c.l.b16 %v493
        %v533 = vunpack.c.l.b16 %v494
        %v534 = vunpack.c.l.b16 %v495
        %v535 = vunpack.c.l.b16 %v496
        %v536 = vunpack.c.l.b16 %v497
        %v537 = vunpack.c.l.b16 %v498
        %v538 = vpack.c.b16 %v523, %v522
        %v539 = vpack.c.b16 %v525, %v524
        %v540 = vpack.c.b16 %v527, %v526
        %v541 = vpack.c.b16 %v529, %v528
        %v542 = vpack.c.b16 %v531, %v530
        %v543 = vpack.c.b16 %v533, %v532
        %v544 = vpack.c.b16 %v535, %v534
        %v545 = vpack.c.b16 %v537, %v536
        %554 = vmatprep.subr.bf16.mxu0 0
        %555 = vmatpush1.bf16.msra.mxu0 %v538
        %556 = vmatprep.subr.bf16.mxu0 0
        %557 = vmatpush1.bf16.msra.mxu0 %v539
        %558 = vmatprep.subr.bf16.mxu0 0
        %559 = vmatpush1.bf16.msra.mxu0 %v540
        %560 = vmatprep.subr.bf16.mxu0 0
        %561 = vmatpush1.bf16.msra.mxu0 %v541
        %562 = vmatprep.subr.bf16.mxu0 0
        %563 = vmatpush1.bf16.msra.mxu0 %v542
        %564 = vmatprep.subr.bf16.mxu0 0
        %565 = vmatpush1.bf16.msra.mxu0 %v543
        %566 = vmatprep.subr.bf16.mxu0 0
        %567 = vmatpush1.bf16.msra.mxu0 %v544
        %568 = vmatprep.subr.bf16.mxu0 0
        %569 = vmatpush1.bf16.msra.mxu0 %v545
        %570 = vmatprep.subr.bf16.mxu0 0
        %571 = vmatpush1.bf16.msra.mxu0 0
        %572 = vmatprep.subr.bf16.mxu0 0
        %573 = vmatpush1.bf16.msra.mxu0 0
        %574 = vmatprep.subr.bf16.mxu0 0
        %575 = vmatpush1.bf16.msra.mxu0 0
        %576 = vmatprep.subr.bf16.mxu0 0
        %577 = vmatpush1.bf16.msra.mxu0 0
        %578 = vmatprep.subr.bf16.mxu0 0
        %579 = vmatpush1.bf16.msra.mxu0 0
        %580 = vmatprep.subr.bf16.mxu0 0
        %581 = vmatpush1.bf16.msra.mxu0 0
        %582 = vmatprep.subr.bf16.mxu0 0
        %583 = vmatpush1.bf16.msra.mxu0 0
        %584 = vmatprep.subr.bf16.mxu0 0
        %585 = vmatpush1.bf16.msra.mxu0 0
        %586 = vmatprep.mubr.bf16.mxu0 0
        %587 = vmatmul.mubr.bf16.gmra.mrb[0].mxu0 %v482
        %v588 = vpop.f32.mrb[0].mxu0
        %v589 = vadd.f32 %v504, %v588
        %v590 = vpop.f32.mrb[0].mxu0
        %v591 = vpop.f32.mrb[0].mxu0
        %v592 = vadd.f32 %v504, %v591
        %v593 = vpop.f32.mrb[0].mxu0
        %594 = vdwg.mxu0
        %v595 = vpack.c.bf16 %v592, %v589
        %v597 = vunpack.c.l.b16 %v595
        %v598 = vunpack.c.h.b16 %v595
        %v599 = vpack.c.b16 %v597, %v597
        %v600 = vpack.c.b16 %v598, %v598
        %603 = vst [vmem:[%s295] sm:$0xf] %v599
        %604 = vst [vmem:[%s295 + $0x4] sm:$0xf] %v600
        %s605 = smul.u32 2, %s19
        %p606 = scmp.lt.s32.totalorder %s605, 3
        %s607 = scalar_select %p606, %s605, 3
        %s608 = smul.addr %s607, 4
        %s609 = scalar_lea.vmem %s7, %s608
        // Predicated region
        $region53: #{dqn_forward.1} parent=47 // pred_check
          %p610 = pneg %p189
        $region54: #{dqn_forward.1} parent=47 // pred_check_branch
          %612 = sbr.rel (%p610) target = $region56
        $region55: #{dqn_forward.1} parent=47 // pred_region
          %s613 = smul.u32 2, %s19
        $region56: #{dqn_forward.1} parent=47 // pred_fallthru
          _
      $region48: #{dqn_forward.1} parent=5 // pred_fallthru
        _
      %p614 = scmp.le.s32.totalorder 2, %s14
      // Predicated region
      $region57: #{dqn_forward.1} parent=5 // pred_check
        %p615 = pneg %p614
      $region58: #{dqn_forward.1} parent=5 // pred_check_branch
        %617 = sbr.rel (%p615) target = $region60
      $region59: #{dqn_forward.1} parent=5 // pred_region
        %s618 = ssub.s32 %s14, 2
        // Predicated region
        $region61: #{dqn_forward.1} parent=59 // pred_check
          %p619 = pneg %p195
        $region62: #{dqn_forward.1} parent=59 // pred_check_branch
          %621 = sbr.rel (%p619) target = $region64
        $region63: #{dqn_forward.1} parent=59 // pred_region
          %s622 = smul.u32 2, %s20
          %p623 = scmp.lt.s32.totalorder %s622, 3
          %s624 = scalar_select %p623, %s622, 3
          %s625 = smul.addr %s624, 4
          %s626 = scalar_lea.vmem %s7, %s625
        $region64: #{dqn_forward.1} parent=59 // pred_fallthru
          _
      $region60: #{dqn_forward.1} parent=5 // pred_fallthru
        _
    $region6: #{dqn_forward.1} parent=1 // loop_footer
      %s18 = sadd.s32 1, %s14
    $region7: #{dqn_forward.1} parent=1 // loop_footer_branch
      %13 = sbr.rel target = $region3
    $region8: #{dqn_forward.1} parent=1 // loop_exit
      _
    %627 = vsyncpa [#allocation3], 1
    %s628 = scalar_lea.sflag [#allocation3], 1
    %629 = vsyncpa %s628, 1

</llo_original>
